<compile_context>
chip_gen: v5e
topology: v5e:2x2
jax: 0.10.0
libtpu: 0.0.40
codegen_flags: <defaults>
</compile_context>

<pallas_src>
import jax
import jax.numpy as jnp
from jax.experimental import pallas as pl
from jax.experimental.pallas import tpu as pltpu

_BN_EPS = 1e-5


def resblock_bn_kernel(x_ref, w1_ref, gamma_ref, beta_ref, w2_ref, b2_ref,
                       out_ref, z_ref):
    # Single grid point; all (full-array) blocks are VMEM-resident.
    x = x_ref[...]                                            # (B, D) f32

    # fc1: bf16 operands, f32 MXU accumulation.  fc1's bias is omitted because
    # training-mode BatchNorm's mean subtraction cancels any constant bias.
    h = jnp.dot(x.astype(jnp.bfloat16), w1_ref[...],
                preferred_element_type=jnp.float32)           # (B, H) f32

    # BatchNorm1d (training mode: batch statistics, biased variance), fused:
    # one traversal for mean and E[h^2], then a single FMA+max epilogue pass.
    mean = jnp.mean(h, axis=0, keepdims=True)                 # (1, H)
    mean_sq = jnp.mean(h * h, axis=0, keepdims=True)          # (1, H)
    var = mean_sq - mean * mean                               # biased variance
    scale = gamma_ref[...] * jax.lax.rsqrt(var + _BN_EPS)     # (1, H), EUP rsqrt
    shift = beta_ref[...] - mean * scale                      # (1, H)
    h = jnp.maximum(h * scale + shift, 0.0)                   # BN affine + ReLU

    # fc2: bf16 operands, f32 accumulation, f32 bias.
    z = jnp.dot(h.astype(jnp.bfloat16), w2_ref[...],
                preferred_element_type=jnp.float32) + b2_ref[...]

    # Module returns (z + x, z); both outputs are consumed, so both are written.
    z_ref[...] = z.astype(z_ref.dtype)
    out_ref[...] = (z + x).astype(out_ref.dtype)              # residual in f32


def prepare_params(w1, b1, gamma, beta, w2, b2):
    """Cold-path, once-per-model parameter prep (NOT in the per-call hot path).

    Expects w1: (inputdim, hiddendim), w2: (hiddendim, inputdim) — i.e. already
    transposed to the x @ W layout.  Casts matmul weights to bf16 (halves their
    DMA).  b1 is mathematically cancelled by the BN mean subtraction; any
    desired per-feature offset belongs in beta.  Accepted for API parity only.
    """
    del b1
    return (w1.astype(jnp.bfloat16),
            gamma.astype(jnp.float32),
            beta.astype(jnp.float32),
            w2.astype(jnp.bfloat16),
            b2.astype(jnp.float32))


@jax.jit
def resblock_forward(x, w1_bf16, gamma, beta, w2_bf16, b2):
    B, D = x.shape
    H = w1_bf16.shape[1]

    # Full-array single blocks (grid=()), so the (8,128) divisibility rule is
    # waived and no host-side padding is needed.
    full = lambda shape: pl.BlockSpec(shape, lambda: tuple(0 for _ in shape))
    out_shape = (jax.ShapeDtypeStruct((B, D), x.dtype),   # z + x
                 jax.ShapeDtypeStruct((B, D), x.dtype))   # z

    out, z = pl.pallas_call(
        resblock_bn_kernel,
        out_shape=out_shape,
        grid=(),
        in_specs=[
            full((B, D)),    # x     (f32)
            full((D, H)),    # w1    (bf16, pre-transposed, pre-cast)
            full((1, H)),    # gamma (f32)
            full((1, H)),    # beta  (f32)
            full((H, D)),    # w2    (bf16, pre-transposed, pre-cast)
            full((1, D)),    # b2    (f32)
        ],
        out_specs=(full((B, D)), full((B, D))),
        compiler_params=pltpu.CompilerParams(
            vmem_limit_bytes=32 * 1024 * 1024),
    )(x, w1_bf16, gamma, beta, w2_bf16, b2)
    return out, z


def reference_forward_f32(x, w1, b1, gamma, beta, w2, b2):
    # Full-f32 PyTorch-semantics reference (training-mode BN, biased variance).
    h = x @ w1 + b1
    mean = jnp.mean(h, axis=0, keepdims=True)
    var = jnp.mean((h - mean) ** 2, axis=0, keepdims=True)
    h = (h - mean) / jnp.sqrt(var + _BN_EPS)
    h = h * gamma + beta
    h = jnp.maximum(h, 0.0)
    z = h @ w2 + b2
    return z + x, z


def reference_forward_mixed(x, w1, b1, gamma, beta, w2, b2):
    # Same mixed-precision / fused-BN recipe as the kernel (bf16 MXU operands,
    # f32 accumulation, E[h^2]-mean^2 variance, fused scale/shift, fc1 bias
    # folded away by the BN mean subtraction).
    del b1
    h = jnp.dot(x.astype(jnp.bfloat16), w1.astype(jnp.bfloat16),
                preferred_element_type=jnp.float32)
    mean = jnp.mean(h, axis=0, keepdims=True)
    mean_sq = jnp.mean(h * h, axis=0, keepdims=True)
    var = mean_sq - mean * mean
    scale = gamma * jax.lax.rsqrt(var + _BN_EPS)
    shift = beta - mean * scale
    h = jnp.maximum(h * scale + shift, 0.0)
    z = jnp.dot(h.astype(jnp.bfloat16), w2.astype(jnp.bfloat16),
                preferred_element_type=jnp.float32) + b2
    return z + x, z


if __name__ == "__main__":
    batch, inputdim, hiddendim = 8, 16, 32

    key = jax.random.PRNGKey(0)
    kx, kw1, kb1, kw2, kb2 = jax.random.split(key, 5)

    x = jax.random.normal(kx, (batch, inputdim), dtype=jnp.float32)

    # Deterministic parameter init (uniform, PyTorch-Linear-like scale),
    # already in x @ W layout.
    lim1 = 1.0 / (inputdim ** 0.5)
    lim2 = 1.0 / (hiddendim ** 0.5)
    w1 = jax.random.uniform(kw1, (inputdim, hiddendim), jnp.float32, -lim1, lim1)
    b1 = jax.random.uniform(kb1, (1, hiddendim), jnp.float32, -lim1, lim1)
    w2 = jax.random.uniform(kw2, (hiddendim, inputdim), jnp.float32, -lim2, lim2)
    b2 = jax.random.uniform(kb2, (1, inputdim), jnp.float32, -lim2, lim2)
    gamma = jnp.ones((1, hiddendim), jnp.float32)   # BatchNorm1d weight init
    beta = jnp.zeros((1, hiddendim), jnp.float32)   # BatchNorm1d bias init

    # Cold path: prepare (cast) parameters once, outside the per-call hot path.
    params = prepare_params(w1, b1, gamma, beta, w2, b2)

    out, z = resblock_forward(x, *params)
    jax.block_until_ready((out, z))

    # Tight check against a reference using the same mixed-precision recipe.
    mref_out, mref_z = reference_forward_mixed(x, w1, b1, gamma, beta, w2, b2)
    assert jnp.allclose(out, mref_out, atol=1e-3, rtol=1e-3)
    assert jnp.allclose(z, mref_z, atol=1e-3, rtol=1e-3)

    # Loose check against the full-f32 PyTorch-semantics reference
    # (slack covers the bf16 matmul operands).
    fref_out, fref_z = reference_forward_f32(x, w1, b1, gamma, beta, w2, b2)
    assert jnp.allclose(out, fref_out, atol=5e-2, rtol=5e-2)
    assert jnp.allclose(z, fref_z, atol=5e-2, rtol=5e-2)

    print("KERNEL_OK")
</pallas_src>

<mosaic_0001>
module attributes {stable_mosaic.version = 11 : i64} {
  func.func @resblock_bn_kernel(%arg0: memref<8x16xf32, #tpu.memory_space<vmem>>, %arg1: memref<16x32xbf16, #tpu.memory_space<vmem>>, %arg2: memref<1x32xf32, #tpu.memory_space<vmem>>, %arg3: memref<1x32xf32, #tpu.memory_space<vmem>>, %arg4: memref<32x16xbf16, #tpu.memory_space<vmem>>, %arg5: memref<1x16xf32, #tpu.memory_space<vmem>>, %arg6: memref<8x16xf32, #tpu.memory_space<vmem>>, %arg7: memref<8x16xf32, #tpu.memory_space<vmem>>) attributes {dimension_semantics = [], scalar_prefetch = 0 : i64, scratch_operands = 0 : i64, tpu.core_type = #tpu.core_type<tc>} {
    %c0 = arith.constant 0 : index
    %c0_0 = arith.constant 0 : index
    %0 = vector.load %arg0[%c0, %c0_0] : memref<8x16xf32, #tpu.memory_space<vmem>>, vector<8x16xf32>
    %1 = arith.truncf %0 : vector<8x16xf32> to vector<8x16xbf16>
    %c0_1 = arith.constant 0 : index
    %c0_2 = arith.constant 0 : index
    %2 = vector.load %arg1[%c0_1, %c0_2] : memref<16x32xbf16, #tpu.memory_space<vmem>>, vector<16x32xbf16>
    %cst = arith.constant dense<0.000000e+00> : vector<8x32xf32>
    %3 = tpu.matmul %1, %2, %cst {dimension_numbers = #tpu.dot_dimension_numbers<[1], [0], [0], [1], [0, 0, 1, 1], [], []>} : vector<8x16xbf16>, vector<16x32xbf16>, vector<8x32xf32> -> vector<8x32xf32>
    %cst_3 = arith.constant dense<0.000000e+00> : vector<32xf32>
    %4 = vector.multi_reduction <add>, %3, %cst_3 [0] : vector<8x32xf32> to vector<32xf32>
    %5 = vector.shape_cast %4 : vector<32xf32> to vector<1x32xf32>
    %cst_4 = arith.constant 8.000000e+00 : f32
    %6 = vector.broadcast %cst_4 : f32 to vector<1x32xf32>
    %7 = arith.divf %5, %6 : vector<1x32xf32>
    %8 = arith.mulf %3, %3 : vector<8x32xf32>
    %cst_5 = arith.constant dense<0.000000e+00> : vector<32xf32>
    %9 = vector.multi_reduction <add>, %8, %cst_5 [0] : vector<8x32xf32> to vector<32xf32>
    %10 = vector.shape_cast %9 : vector<32xf32> to vector<1x32xf32>
    %cst_6 = arith.constant 8.000000e+00 : f32
    %11 = vector.broadcast %cst_6 : f32 to vector<1x32xf32>
    %12 = arith.divf %10, %11 : vector<1x32xf32>
    %13 = arith.mulf %7, %7 : vector<1x32xf32>
    %14 = arith.subf %12, %13 : vector<1x32xf32>
    %c0_7 = arith.constant 0 : index
    %c0_8 = arith.constant 0 : index
    %15 = vector.load %arg2[%c0_7, %c0_8] : memref<1x32xf32, #tpu.memory_space<vmem>>, vector<1x32xf32>
    %cst_9 = arith.constant 9.99999974E-6 : f32
    %16 = vector.broadcast %cst_9 : f32 to vector<1x32xf32>
    %17 = arith.addf %14, %16 : vector<1x32xf32>
    %18 = math.rsqrt %17 : vector<1x32xf32>
    %19 = arith.mulf %15, %18 : vector<1x32xf32>
    %c0_10 = arith.constant 0 : index
    %c0_11 = arith.constant 0 : index
    %20 = vector.load %arg3[%c0_10, %c0_11] : memref<1x32xf32, #tpu.memory_space<vmem>>, vector<1x32xf32>
    %21 = arith.mulf %7, %19 : vector<1x32xf32>
    %22 = arith.subf %20, %21 : vector<1x32xf32>
    %23 = vector.broadcast %19 : vector<1x32xf32> to vector<8x32xf32>
    %24 = arith.mulf %3, %23 : vector<8x32xf32>
    %25 = vector.broadcast %22 : vector<1x32xf32> to vector<8x32xf32>
    %26 = arith.addf %24, %25 : vector<8x32xf32>
    %cst_12 = arith.constant 0.000000e+00 : f32
    %27 = vector.broadcast %cst_12 : f32 to vector<8x32xf32>
    %28 = arith.maximumf %26, %27 : vector<8x32xf32>
    %29 = arith.truncf %28 : vector<8x32xf32> to vector<8x32xbf16>
    %c0_13 = arith.constant 0 : index
    %c0_14 = arith.constant 0 : index
    %30 = vector.load %arg4[%c0_13, %c0_14] : memref<32x16xbf16, #tpu.memory_space<vmem>>, vector<32x16xbf16>
    %cst_15 = arith.constant dense<0.000000e+00> : vector<8x16xf32>
    %31 = tpu.matmul %29, %30, %cst_15 {dimension_numbers = #tpu.dot_dimension_numbers<[1], [0], [0], [1], [0, 0, 1, 1], [], []>} : vector<8x32xbf16>, vector<32x16xbf16>, vector<8x16xf32> -> vector<8x16xf32>
    %c0_16 = arith.constant 0 : index
    %c0_17 = arith.constant 0 : index
    %32 = vector.load %arg5[%c0_16, %c0_17] : memref<1x16xf32, #tpu.memory_space<vmem>>, vector<1x16xf32>
    %33 = vector.broadcast %32 : vector<1x16xf32> to vector<8x16xf32>
    %34 = arith.addf %31, %33 : vector<8x16xf32>
    %c0_18 = arith.constant 0 : index
    %c0_19 = arith.constant 0 : index
    %35 = vector.load %arg7[%c0_18, %c0_19] : memref<8x16xf32, #tpu.memory_space<vmem>>, vector<8x16xf32>
    tpu.vector_store %arg7[%c0_18, %c0_19], %34 {strides = array<i32>} : memref<8x16xf32, #tpu.memory_space<vmem>>, vector<8x16xf32>,
    %36 = arith.addf %34, %0 : vector<8x16xf32>
    %c0_20 = arith.constant 0 : index
    %c0_21 = arith.constant 0 : index
    %37 = vector.load %arg6[%c0_20, %c0_21] : memref<8x16xf32, #tpu.memory_space<vmem>>, vector<8x16xf32>
    tpu.vector_store %arg6[%c0_20, %c0_21], %36 {strides = array<i32>} : memref<8x16xf32, #tpu.memory_space<vmem>>, vector<8x16xf32>,
    return
  }
}

</mosaic_0001>

<llo_original>
// kernel: resblock_forward.1
$region0: #{resblock_forward.1}
  #allocation0 [shape = 'u32[]', space=smem, size = 0x4, offset = 0x4, fixed_abs, tag = 'smem constant byte address 0x4 - core index']
  #allocation1 [shape = 'u32[72,128]{1,0:T(1,128)}', space=vmem, size = 0x9000, scoped, tag = 'internal scratch']
  %s0 = inlined_call_operand.vmem [shape: f32[8,16], index: 0, kind: input, shape index: {}]
  %s1 = inlined_call_operand.vmem [shape: bf16[16,32], index: 1, kind: input, shape index: {}]
  %s2 = inlined_call_operand.vmem [shape: f32[1,32], index: 2, kind: input, shape index: {}]
  %s3 = inlined_call_operand.vmem [shape: f32[1,32], index: 3, kind: input, shape index: {}]
  %s4 = inlined_call_operand.vmem [shape: bf16[32,16], index: 4, kind: input, shape index: {}]
  %s5 = inlined_call_operand.vmem [shape: f32[1,16], index: 5, kind: input, shape index: {}]
  %s6 = inlined_call_operand.hbm [shape: f32[8,16], index: 6, kind: output, shape index: {0}]
  %s7 = inlined_call_operand.hbm [shape: f32[8,16], index: 7, kind: output, shape index: {1}]
  %8 = xla_tuple %s6, %s7
  %s9 = sld [smem:[#allocation0]]
  $region42: #{resblock_forward.1} parent=0
    _
  %s11 = ssub.s32 1, %s9
  %s12 = scalar_select 0, %s11, %s9
  $region1: #{resblock_forward.1} parent=0
    #allocation2 [shape = 'u8[4096]{0}', space=vmem, size = 0x1000, scoped, tag = 'output window, operand 0, single buffered']
    #allocation3 [shape = 's32[1]{0}', space=sflag, size = 0x4, scoped, tag = 'scoped memory for resblock_forward.1']
    #allocation4 [shape = 'u8[4096]{0}', space=vmem, size = 0x1000, scoped, tag = 'output window, operand 1, single buffered']
    #allocation5 [shape = 's32[1]{0}', space=sflag, size = 0x4, scoped, tag = 'scoped memory for resblock_forward.1']
    %13 = vsyncpa [#allocation3], 0
    %14 = vsyncpa [#allocation5], 0
    // Predicated region
    $region2: #{resblock_forward.1} parent=1 // pred_check
      _
    $region3: #{resblock_forward.1} parent=1 // pred_check_branch
      %16 = sbr.rel (0) target = $region5
    $region4: #{resblock_forward.1} parent=1 // pred_region
      _
    $region5: #{resblock_forward.1} parent=1 // pred_fallthru
      _
    // Predicated region
    $region6: #{resblock_forward.1} parent=1 // pred_check
      _
    $region7: #{resblock_forward.1} parent=1 // pred_check_branch
      %18 = sbr.rel (0) target = $region9
    $region8: #{resblock_forward.1} parent=1 // pred_region
      _
    $region9: #{resblock_forward.1} parent=1 // pred_fallthru
      _
    // Predicated region
    $region10: #{resblock_forward.1} parent=1 // pred_check
      _
    $region11: #{resblock_forward.1} parent=1 // pred_check_branch
      %20 = sbr.rel (0) target = $region13
    $region12: #{resblock_forward.1} parent=1 // pred_region
      _
    $region13: #{resblock_forward.1} parent=1 // pred_fallthru
      _
    // Predicated region
    $region14: #{resblock_forward.1} parent=1 // pred_check
      _
    $region15: #{resblock_forward.1} parent=1 // pred_check_branch
      %22 = sbr.rel (0) target = $region17
    $region16: #{resblock_forward.1} parent=1 // pred_region
      _
    $region17: #{resblock_forward.1} parent=1 // pred_fallthru
      _
    // Predicated region
    $region18: #{resblock_forward.1} parent=1 // pred_check
      _
    $region19: #{resblock_forward.1} parent=1 // pred_check_branch
      %24 = sbr.rel (0) target = $region21
    $region20: #{resblock_forward.1} parent=1 // pred_region
      _
    $region21: #{resblock_forward.1} parent=1 // pred_fallthru
      _
    // Predicated region
    $region22: #{resblock_forward.1} parent=1 // pred_check
      _
    $region23: #{resblock_forward.1} parent=1 // pred_check_branch
      %26 = sbr.rel (0) target = $region25
    $region24: #{resblock_forward.1} parent=1 // pred_region
      _
    $region25: #{resblock_forward.1} parent=1 // pred_fallthru
      _
    %v28 = vld [vmem:[%s0] sm:$0xff]
    %v29 = vpack.c.bf16 %v28, %v28
    %v30 = vld [vmem:[%s1] sm:$0xf]
    %v31 = vld [vmem:[%s1 + $0x4] sm:$0xf]
    %v34 = vunpack.c.l.b16 %v30
    %v35 = vunpack.c.l.b16 %v31
    %v36 = vpack.c.b16 %v35, %v34
    %vm38 = vcmask 130048
    %v40 = vsel %vm38, %v29, 0
    %42 = vmatpush.bf16.msra.mxu0 0
    %43 = vmatpush.bf16.msra.mxu0 0
    %44 = vmatpush.bf16.msra.mxu0 0
    %45 = vmatpush.bf16.msra.mxu0 0
    %46 = vmatpush.bf16.msra.mxu0 0
    %47 = vmatpush.bf16.msra.mxu0 0
    %48 = vmatpush.bf16.msra.mxu0 0
    %49 = vmatpush.bf16.msra.mxu0 %v36
    %50 = vmatmul.bf16.gmra.mxu0 %v40
    %v51 = vpop.f32.mrf.mxu0
    %v52 = vadd.f32 0.0, %v51
    %v53 = vpop.f32.mrf.mxu0
    %54 = vdwg.mxu0
    %vm55 = vcmask 261120
    %v56 = vsel %vm55, %v52, 0.0
    %v57 = vrot.slane %v56, 4
    %v58 = vadd.f32 %v56, %v57
    %v59 = vrot.slane %v58, 2
    %v60 = vadd.f32 %v58, %v59
    %v61 = vrot.slane %v60, 1
    %v62 = vadd.f32 %v60, %v61
    %v63 = vrcp.pop 8.0
    %v64 = vmul.f32 8.0, %v63
    %v65 = vsub.f32 1.0, %v64
    %v66 = vmul.f32 %v63, %v65
    %v67 = vadd.f32 %v63, %v66
    %vm68 = vweird.f32 %v63
    %v69 = vsel %vm68, %v63, %v67
    %v70 = vmul.f32 %v62, %v69
    %v71 = vmul.f32 %v52, %v52
    %v72 = vsel %vm55, %v71, 0.0
    %v73 = vrot.slane %v72, 4
    %v74 = vadd.f32 %v72, %v73
    %v75 = vrot.slane %v74, 2
    %v76 = vadd.f32 %v74, %v75
    %v77 = vrot.slane %v76, 1
    %v78 = vadd.f32 %v76, %v77
    %v79 = vmul.f32 %v78, %v69
    %v80 = vmul.f32 %v70, %v70
    %v81 = vsub.f32 %v79, %v80
    %v82 = vld [vmem:[%s2] sm:$0x1]
    %v83 = vadd.f32 %v81, 1e-05
    %v84 = vrsqrt.pop %v83
    %v85 = vmul.f32 %v84, %v83
    %v86 = vmul.f32 %v85, %v84
    %v87 = vmul.f32 0.5, %v86
    %v88 = vsub.f32 1.5, %v87
    %v89 = vmul.f32 %v84, %v88
    %vm90 = vweird.f32 %v83
    %vm91 = vweird.f32 %v84
    %vm92 = vmor %vm90, %vm91
    %v93 = vsel %vm92, %v84, %v89
    %v94 = vmul.f32 %v82, %v93
    %v95 = vld [vmem:[%s3] sm:$0x1]
    %v96 = vmul.f32 %v70, %v94
    %v97 = vsub.f32 %v95, %v96
    %v99 = vperm.slane %v94, 0
    %v101 = vmul.f32 %v52, %v99
    %v103 = vperm.slane %v97, 0
    %v105 = vadd.f32 %v101, %v103
    %v106 = vmax.f32 %v105, 0.0
    %v107 = vpack.c.bf16 %v106, %v106
    %v108 = vld [vmem:[%s4] sm:$0xf]
    %v109 = vld [vmem:[%s4 + $0x4] sm:$0xf]
    %v110 = vld [vmem:[%s4 + $0x8] sm:$0xf]
    %v111 = vld [vmem:[%s4 + $0xc] sm:$0xf]
    %v112 = vld [vmem:[%s5] sm:$0x1]
    %v114 = vperm.slane %v112, 0
    %v120 = vunpack.c.l.b16 %v108
    %v121 = vunpack.c.l.b16 %v109
    %v122 = vunpack.c.l.b16 %v110
    %v123 = vunpack.c.l.b16 %v111
    %v124 = vpack.c.b16 %v121, %v120
    %v125 = vpack.c.b16 %v123, %v122
    %v129 = vsel %vm55, %v107, 0
    %131 = vmatpush.bf16.msra.mxu0 0
    %132 = vmatpush.bf16.msra.mxu0 0
    %133 = vmatpush.bf16.msra.mxu0 0
    %134 = vmatpush.bf16.msra.mxu0 0
    %135 = vmatpush.bf16.msra.mxu0 0
    %136 = vmatpush.bf16.msra.mxu0 0
    %137 = vmatpush.bf16.msra.mxu0 %v125
    %138 = vmatpush.bf16.msra.mxu0 %v124
    %139 = vmatmul.bf16.gmra.mxu0 %v129
    %v140 = vpop.f32.mrf.mxu0
    %v141 = vadd.f32 %v114, %v140
    %v142 = vpop.f32.mrf.mxu0
    %143 = vdwg.mxu0
    %144 = vst.msk [vmem:[#allocation4] sm:$0xff] %vm38, %v141
    %v145 = vadd.f32 %v141, %v28
    %146 = vst.msk [vmem:[#allocation2] sm:$0xff] %vm38, %v145
    // Predicated region
    $region26: #{resblock_forward.1} parent=1 // pred_check
      _
    $region27: #{resblock_forward.1} parent=1 // pred_check_branch
      %148 = sbr.rel (0) target = $region29
    $region28: #{resblock_forward.1} parent=1 // pred_region
      %150 = vsyncadd [#allocation3], 0
      %s152 = sshll.u32 [#allocation2], 4
      %s153 = int_to_ptr.vmem [resolvable:$true] %s152
      %s154 = sshll.u32 %s6, 4
      %s155 = int_to_ptr.hbm [resolvable:$true] %s154
      %157 = dma.vmem_to_hbm [thread:$0]  %s153, 128, %s155, [#allocation3]
    $region29: #{resblock_forward.1} parent=1 // pred_fallthru
      _
    // Predicated region
    $region30: #{resblock_forward.1} parent=1 // pred_check
      _
    $region31: #{resblock_forward.1} parent=1 // pred_check_branch
      %159 = sbr.rel (0) target = $region33
    $region32: #{resblock_forward.1} parent=1 // pred_region
      %161 = vsyncadd [#allocation5], 0
      %s163 = sshll.u32 [#allocation4], 4
      %s164 = int_to_ptr.vmem [resolvable:$true] %s163
      %s165 = sshll.u32 %s7, 4
      %s166 = int_to_ptr.hbm [resolvable:$true] %s165
      %168 = dma.vmem_to_hbm [thread:$0]  %s164, 128, %s166, [#allocation5]
    $region33: #{resblock_forward.1} parent=1 // pred_fallthru
      _
    // Predicated region
    $region34: #{resblock_forward.1} parent=1 // pred_check
      _
    $region35: #{resblock_forward.1} parent=1 // pred_check_branch
      %170 = sbr.rel (0) target = $region37
    $region36: #{resblock_forward.1} parent=1 // pred_region
      %172 = dma.done [#allocation3], 128
    $region37: #{resblock_forward.1} parent=1 // pred_fallthru
      _
    // Predicated region
    $region38: #{resblock_forward.1} parent=1 // pred_check
      _
    $region39: #{resblock_forward.1} parent=1 // pred_check_branch
      %174 = sbr.rel (0) target = $region41
    $region40: #{resblock_forward.1} parent=1 // pred_region
      %176 = dma.done [#allocation5], 128
    $region41: #{resblock_forward.1} parent=1 // pred_fallthru
      _
    %177 = vsyncpa [#allocation3], 1
    %178 = vsyncpa [#allocation5], 1

</llo_original>
